<compile_context>
chip_gen: v5e
topology: v5e:2x2
jax: 0.10.0
libtpu: 0.0.40
codegen_flags: <defaults>
</compile_context>

<pallas_src>
from functools import partial

import jax
import jax.numpy as jnp
from jax import lax
from jax.experimental import pallas as pl
from jax.experimental.pallas import tpu as pltpu


def sft_kernel(x_ref, rm_ref, rt_ref, rb_ref, wma_ref, wf_ref, brd_ref, o_ref,
               halo_ref, stk_ref, cat_ref, *, W, TH, C):
    # x_ref  : (1, C, P)          current (batch, row-tile) slab of x, P = TH*W
    # rm_ref : (1, C, P)          matching row-tile of res
    # rt_ref : (1, 1, C, W)       row above the tile (zeros at the top border)
    # rb_ref : (1, 1, C, W)       row below the tile (zeros at the bottom border)
    # wma_ref: (2C, 9C+1)         merged convmul|convadd weights, im2col order,
    #                             biases folded as the last column
    # wf_ref : (C, 2C+1)          1x1 fuse conv on stacked [x ; t ; 1]
    # brd_ref: (2, P) int32       row 0: col==0 flags, row 1: col==W-1 flags
    # o_ref  : (1, C, P)
    # halo_ref: (C, (TH+2)*W + 2) stitched halo slab; lane 0 and the last lane
    #           are never written and only ever read at select-masked positions
    # stk_ref : (9C+1, P)         im2col scratch (+ ones row for the bias)
    # cat_ref : (2C+1, P)         [x ; t ; 1] scratch for the fuse conv
    P = TH * W

    # --- stitch the (TH+2)-row halo slab: [top row | tile rows | bottom row]
    halo_ref[:, pl.ds(1, W)] = rt_ref[0, 0]
    halo_ref[:, pl.ds(1 + W, P)] = rm_ref[0]
    halo_ref[:, pl.ds(1 + W + P, W)] = rb_ref[0, 0]

    # precomputed left/right image-border masks (resident input, no iota/mod)
    mask_l = brd_ref[0:1, :] != 0          # tap column w-1 is outside the image
    mask_r = brd_ref[1:2, :] != 0          # tap column w+1 is outside the image

    # --- im2col: 9 static lane-offset windows -> (9C+1, P) stacked scratch
    for dy in range(3):
        for dx in range(3):
            win = halo_ref[:, pl.ds(dy * W + dx, P)]
            if dx == 0:
                win = jnp.where(mask_l, jnp.zeros_like(win), win)
            elif dx == 2:
                win = jnp.where(mask_r, jnp.zeros_like(win), win)
            r0 = (3 * dy + dx) * C
            stk_ref[r0:r0 + C, :] = win
    stk_ref[9 * C:9 * C + 1, :] = jnp.ones((1, P), jnp.float32)   # bias row

    # --- one MXU pass: [mul ; add] = wma @ stacked   (K = 9C+1, biases folded)
    acc = jnp.dot(wma_ref[...], stk_ref[...].astype(wma_ref.dtype),
                  preferred_element_type=jnp.float32)

    x = x_ref[0].astype(jnp.float32)
    t = acc[:C, :] * x + acc[C:, :]

    # --- fuse = Conv1x1(concat([x, t])): one MXU pass on [x ; t ; 1]
    cat_ref[0:C, :] = x
    cat_ref[C:2 * C, :] = t
    cat_ref[2 * C:2 * C + 1, :] = jnp.ones((1, P), jnp.float32)
    fuse = jnp.dot(wf_ref[...], cat_ref[...].astype(wf_ref.dtype),
                   preferred_element_type=jnp.float32)
    o_ref[0] = fuse.astype(o_ref.dtype)


def _vmem_limit_bytes():
    """Explicit scoped-VMEM limit sized from the actual chip (v5e/v6e: 128 MiB
    physical, v7x: 64 MiB per TensorCore), with headroom left for XLA."""
    try:
        phys = int(pltpu.get_tpu_info().vmem_capacity_bytes)
    except Exception:
        phys = 64 << 20           # conservative fallback: v7x per-core VMEM
    return max(min(int(phys * 0.65), 88 << 20), 16 << 20)


def _aligned_tiles(H, W):
    return [th for th in range(1, H + 1)
            if H % th == 0 and (th == H or (th * W) % 128 == 0)]


def _pick_tile_h(N, H, W, C, plane_budget):
    """Largest row tile TH that divides H, keeps the block lane count a
    multiple of 128 (or covers the full image) and fits the per-plane VMEM
    budget; capped so the grid has >= 2 steps (v7x has 2 TensorCores sharded
    over the parallel grid axes)."""
    cand = _aligned_tiles(H, W)
    fit = [t for t in cand if t * W * C * 4 <= plane_budget] or [min(cand)]
    th = max(fit)
    if N * (H // th) < 2:
        smaller = [t for t in fit if t < H]
        if smaller:
            th = max(smaller)
    return th


def sft_forward(x_nchw, res_nchw, params, tile_h=None, matmul_dtype=jnp.float32):
    """SFT forward.  x, res: (N, C, H, W) float32 -> (N, C, H, W).

    matmul_dtype=jnp.bfloat16 runs both MXU contractions with bf16 operands
    (f32 accumulate): full-rate MXU on v6e/v7x at reduced precision."""
    wmul, bmul, wadd, badd, wfx, wft, bf = params
    N, C, H, W = x_nchw.shape
    assert res_nchw.shape == (N, C, H, W)

    vmem_limit = _vmem_limit_bytes()
    # true live footprint is ~28 (C, TH*W) f32 planes per step: double-buffered
    # x/res/out blocks, halo + (9C+1)-row + (2C+1)-row scratches, and the
    # matmul/elementwise intermediates -- not 1 plane.
    plane_budget = max((vmem_limit - (4 << 20)) // 28, 64 << 10)

    TH = _pick_tile_h(N, H, W, C, plane_budget) if tile_h is None else tile_h
    assert H % TH == 0, "row tile must divide H"
    P = TH * W
    assert TH == H or P % 128 == 0, "row tile must give lane-aligned blocks"
    nH = H // TH

    # activations in native NCHW, spatially flattened (free metadata reshape)
    x = x_nchw.reshape(N, C, H * W)
    res_mid = res_nchw.reshape(N, C, H * W)

    # one-row halo views, (N, nH, C, W) so their (C, W) blocks are full-dim
    # blocks (legal for any W); image-border rows are zero by construction.
    zero_row = jnp.zeros((N, C, 1, W), res_nchw.dtype)
    above = res_nchw[:, :, TH - 1::TH, :][:, :, :nH - 1, :]   # row th*TH - 1
    below = res_nchw[:, :, TH::TH, :]                          # row th*TH + TH
    res_top = jnp.transpose(jnp.concatenate([zero_row, above], axis=2),
                            (0, 2, 1, 3))
    res_bot = jnp.transpose(jnp.concatenate([below, zero_row], axis=2),
                            (0, 2, 1, 3))

    # merged convmul|convadd weights in im2col order, bias as last column
    wma = jnp.transpose(jnp.concatenate([wmul, wadd], axis=-1), (3, 0, 1, 2))
    wma = wma.reshape(2 * C, 9 * C)
    bma = jnp.concatenate([bmul, badd]).reshape(2 * C, 1)
    wma_flat = jnp.concatenate([wma, bma], axis=1).astype(matmul_dtype)

    # 1x1 fuse conv on stacked [x ; t ; 1]
    wf = jnp.transpose(jnp.concatenate([wfx, wft], axis=0))          # (C, 2C)
    wf_flat = jnp.concatenate([wf, bf.reshape(C, 1)], axis=1).astype(matmul_dtype)

    # per-lane left/right image-border flags (precomputed; no per-step iota)
    col = jnp.arange(P, dtype=jnp.int32) % W
    border = jnp.stack([(col == 0), (col == W - 1)]).astype(jnp.int32)

    kernel = partial(sft_kernel, W=W, TH=TH, C=C)
    out = pl.pallas_call(
        kernel,
        out_shape=jax.ShapeDtypeStruct((N, C, H * W), x_nchw.dtype),
        grid_spec=pltpu.PrefetchScalarGridSpec(
            num_scalar_prefetch=0,
            grid=(N, nH),
            in_specs=[
                pl.BlockSpec((1, C, P), lambda n, th: (n, 0, th)),        # x
                pl.BlockSpec((1, C, P), lambda n, th: (n, 0, th)),        # res tile
                pl.BlockSpec((1, 1, C, W), lambda n, th: (n, th, 0, 0)),  # top halo row
                pl.BlockSpec((1, 1, C, W), lambda n, th: (n, th, 0, 0)),  # bottom halo row
                pl.BlockSpec((2 * C, 9 * C + 1), lambda n, th: (0, 0)),   # wma | bma
                pl.BlockSpec((C, 2 * C + 1), lambda n, th: (0, 0)),       # wf | bf
                pl.BlockSpec((2, P), lambda n, th: (0, 0)),               # border masks
            ],
            out_specs=pl.BlockSpec((1, C, P), lambda n, th: (n, 0, th)),
            scratch_shapes=[
                pltpu.VMEM((C, (TH + 2) * W + 2), jnp.float32),   # halo slab
                pltpu.VMEM((9 * C + 1, P), jnp.float32),          # im2col stack
                pltpu.VMEM((2 * C + 1, P), jnp.float32),          # [x ; t ; 1]
            ],
        ),
        compiler_params=pltpu.CompilerParams(
            dimension_semantics=("parallel", "parallel"),
            vmem_limit_bytes=vmem_limit),
    )(x, res_mid, res_top, res_bot, wma_flat, wf_flat, border)

    return out.reshape(N, C, H, W)


def reference_sft(x_nchw, res_nchw, params):
    """Pure-JAX reference (lax.conv) for correctness check."""
    wmul, bmul, wadd, badd, wfx, wft, bf = params
    x = jnp.transpose(x_nchw, (0, 2, 3, 1))
    res = jnp.transpose(res_nchw, (0, 2, 3, 1))
    dn = lax.conv_dimension_numbers(x.shape, wmul.shape, ("NHWC", "HWIO", "NHWC"))
    mul = lax.conv_general_dilated(res, wmul, (1, 1), "SAME",
                                   dimension_numbers=dn) + bmul
    add = lax.conv_general_dilated(res, wadd, (1, 1), "SAME",
                                   dimension_numbers=dn) + badd
    t = mul * x + add
    cat = jnp.concatenate([x, t], axis=-1)
    wfuse = jnp.concatenate([wfx, wft], axis=0)[None, None]   # (1,1,2C,C) HWIO
    dn1 = lax.conv_dimension_numbers(cat.shape, wfuse.shape, ("NHWC", "HWIO", "NHWC"))
    fuse = lax.conv_general_dilated(cat, wfuse, (1, 1), "SAME",
                                    dimension_numbers=dn1) + bf
    return jnp.transpose(fuse, (0, 3, 1, 2))


def init_params(key, nc):
    k = jax.random.split(key, 7)
    s3 = 0.1
    wmul = s3 * jax.random.normal(k[0], (3, 3, nc, nc), jnp.float32)   # HWIO
    bmul = s3 * jax.random.normal(k[1], (nc,), jnp.float32)
    wadd = s3 * jax.random.normal(k[2], (3, 3, nc, nc), jnp.float32)
    badd = s3 * jax.random.normal(k[3], (nc,), jnp.float32)
    wfx = s3 * jax.random.normal(k[4], (nc, nc), jnp.float32)   # rows: x chans
    wft = s3 * jax.random.normal(k[5], (nc, nc), jnp.float32)   # rows: t chans
    bf = s3 * jax.random.normal(k[6], (nc,), jnp.float32)
    return (wmul, bmul, wadd, badd, wfx, wft, bf)


if __name__ == "__main__":
    key = jax.random.PRNGKey(0)
    kx, kr, kp = jax.random.split(key, 3)

    N, C, H, W = 2, 4, 16, 16
    x = jax.random.normal(kx, (N, C, H, W), jnp.float32)
    res = jax.random.normal(kr, (N, C, H, W), jnp.float32)
    params = init_params(kp, C)

    ref = reference_sft(x, res, params)

    # multi-row-tile path (exercises halo stitching across tiles)
    out = jax.block_until_ready(sft_forward(x, res, params, tile_h=8))
    assert out.shape == (N, C, H, W)
    assert jnp.allclose(out, ref, atol=1e-4, rtol=1e-4), "mismatch (tile_h=8)"

    # auto-picked tile (single tile per image, both halo rows zeroed)
    out2 = jax.block_until_ready(sft_forward(x, res, params))
    assert jnp.allclose(out2, ref, atol=1e-4, rtol=1e-4), "mismatch (auto tile)"

    # reduced-precision MXU path (bf16 operands, f32 accumulate) for v6e/v7x
    out3 = jax.block_until_ready(
        sft_forward(x, res, params, tile_h=8, matmul_dtype=jnp.bfloat16))
    assert float(jnp.max(jnp.abs(out3 - ref))) < 0.3, "mismatch (bf16 path)"

    print("KERNEL_OK")
</pallas_src>

<mosaic_0001>
module attributes {stable_mosaic.version = 11 : i64} {
  func.func @sft_kernel(%arg0: i32, %arg1: i32, %arg2: memref<1x4x128xf32, #tpu.memory_space<vmem>>, %arg3: memref<1x4x128xf32, #tpu.memory_space<vmem>>, %arg4: memref<1x1x4x16xf32, #tpu.memory_space<vmem>>, %arg5: memref<1x1x4x16xf32, #tpu.memory_space<vmem>>, %arg6: memref<8x37xf32, #tpu.memory_space<vmem>>, %arg7: memref<4x9xf32, #tpu.memory_space<vmem>>, %arg8: memref<2x128xi32, #tpu.memory_space<vmem>>, %arg9: memref<1x4x128xf32, #tpu.memory_space<vmem>>, %arg10: memref<4x162xf32, #tpu.memory_space<vmem>>, %arg11: memref<37x128xf32, #tpu.memory_space<vmem>>, %arg12: memref<9x128xf32, #tpu.memory_space<vmem>>) attributes {dimension_semantics = [#tpu.dimension_semantics<parallel>, #tpu.dimension_semantics<parallel>], iteration_bounds = array<i64: 2, 2>, scalar_prefetch = 0 : i64, scratch_operands = 3 : i64, tpu.core_type = #tpu.core_type<tc>, window_params = [{transform_indices = @transform_0, window_bounds = array<i64: 1, 4, 128>}, {transform_indices = @transform_1, window_bounds = array<i64: 1, 4, 128>}, {transform_indices = @transform_2, window_bounds = array<i64: 1, 1, 4, 16>}, {transform_indices = @transform_3, window_bounds = array<i64: 1, 1, 4, 16>}, {pipeline_mode = #tpu.pipeline_mode<synchronous>, transform_indices = @transform_4, window_bounds = array<i64: 8, 37>}, {pipeline_mode = #tpu.pipeline_mode<synchronous>, transform_indices = @transform_5, window_bounds = array<i64: 4, 9>}, {pipeline_mode = #tpu.pipeline_mode<synchronous>, transform_indices = @transform_6, window_bounds = array<i64: 2, 128>}, {transform_indices = @transform_7, window_bounds = array<i64: 1, 4, 128>}]} {
    %c0 = arith.constant 0 : index
    %c0_0 = arith.constant 0 : index
    %c0_1 = arith.constant 0 : index
    %c0_2 = arith.constant 0 : index
    %0 = vector.load %arg4[%c0, %c0_0, %c0_1, %c0_2] : memref<1x1x4x16xf32, #tpu.memory_space<vmem>>, vector<1x1x4x16xf32>
    %1 = vector.shape_cast %0 : vector<1x1x4x16xf32> to vector<4x16xf32>
    %c0_3 = arith.constant 0 : index
    %c1 = arith.constant 1 : index
    %2 = vector.load %arg10[%c0_3, %c1] : memref<4x162xf32, #tpu.memory_space<vmem>>, vector<4x16xf32>
    tpu.vector_store %arg10[%c0_3, %c1], %1 {strides = array<i32>} : memref<4x162xf32, #tpu.memory_space<vmem>>, vector<4x16xf32>,
    %c0_4 = arith.constant 0 : index
    %c0_5 = arith.constant 0 : index
    %c0_6 = arith.constant 0 : index
    %3 = vector.load %arg3[%c0_4, %c0_5, %c0_6] : memref<1x4x128xf32, #tpu.memory_space<vmem>>, vector<1x4x128xf32>
    %4 = vector.shape_cast %3 : vector<1x4x128xf32> to vector<4x128xf32>
    %c0_7 = arith.constant 0 : index
    %c17 = arith.constant 17 : index
    %5 = vector.load %arg10[%c0_7, %c17] : memref<4x162xf32, #tpu.memory_space<vmem>>, vector<4x128xf32>
    tpu.vector_store %arg10[%c0_7, %c17], %4 {strides = array<i32>} : memref<4x162xf32, #tpu.memory_space<vmem>>, vector<4x128xf32>,
    %c0_8 = arith.constant 0 : index
    %c0_9 = arith.constant 0 : index
    %c0_10 = arith.constant 0 : index
    %c0_11 = arith.constant 0 : index
    %6 = vector.load %arg5[%c0_8, %c0_9, %c0_10, %c0_11] : memref<1x1x4x16xf32, #tpu.memory_space<vmem>>, vector<1x1x4x16xf32>
    %7 = vector.shape_cast %6 : vector<1x1x4x16xf32> to vector<4x16xf32>
    %c0_12 = arith.constant 0 : index
    %c145 = arith.constant 145 : index
    %8 = vector.load %arg10[%c0_12, %c145] : memref<4x162xf32, #tpu.memory_space<vmem>>, vector<4x16xf32>
    tpu.vector_store %arg10[%c0_12, %c145], %7 {strides = array<i32>} : memref<4x162xf32, #tpu.memory_space<vmem>>, vector<4x16xf32>,
    %c0_13 = arith.constant 0 : index
    %c0_14 = arith.constant 0 : index
    %9 = vector.load %arg8[%c0_13, %c0_14] : memref<2x128xi32, #tpu.memory_space<vmem>>, vector<1x128xi32>
    %c0_i32 = arith.constant 0 : i32
    %10 = vector.broadcast %c0_i32 : i32 to vector<1x128xi32>
    %11 = arith.cmpi ne, %9, %10 : vector<1x128xi32>
    %c1_15 = arith.constant 1 : index
    %c0_16 = arith.constant 0 : index
    %12 = vector.load %arg8[%c1_15, %c0_16] : memref<2x128xi32, #tpu.memory_space<vmem>>, vector<1x128xi32>
    %c0_i32_17 = arith.constant 0 : i32
    %13 = vector.broadcast %c0_i32_17 : i32 to vector<1x128xi32>
    %14 = arith.cmpi ne, %12, %13 : vector<1x128xi32>
    %c0_18 = arith.constant 0 : index
    %c0_19 = arith.constant 0 : index
    %15 = vector.load %arg10[%c0_18, %c0_19] : memref<4x162xf32, #tpu.memory_space<vmem>>, vector<4x128xf32>
    %cst = arith.constant 0.000000e+00 : f32
    %16 = vector.broadcast %cst : f32 to vector<4x128xf32>
    %17 = vector.shape_cast %11 : vector<1x128xi1> to vector<1x128xi1>
    %18 = vector.broadcast %17 : vector<1x128xi1> to vector<4x128xi1>
    %19 = arith.select %18, %16, %15 : vector<4x128xi1>, vector<4x128xf32>
    %c0_20 = arith.constant 0 : index
    %c0_21 = arith.constant 0 : index
    %20 = vector.load %arg11[%c0_20, %c0_21] : memref<37x128xf32, #tpu.memory_space<vmem>>, vector<4x128xf32>
    tpu.vector_store %arg11[%c0_20, %c0_21], %19 {strides = array<i32>} : memref<37x128xf32, #tpu.memory_space<vmem>>, vector<4x128xf32>,
    %c0_22 = arith.constant 0 : index
    %c1_23 = arith.constant 1 : index
    %21 = vector.load %arg10[%c0_22, %c1_23] : memref<4x162xf32, #tpu.memory_space<vmem>>, vector<4x128xf32>
    %c4 = arith.constant 4 : index
    %c0_24 = arith.constant 0 : index
    %22 = vector.load %arg11[%c4, %c0_24] : memref<37x128xf32, #tpu.memory_space<vmem>>, vector<4x128xf32>
    tpu.vector_store %arg11[%c4, %c0_24], %21 {strides = array<i32>} : memref<37x128xf32, #tpu.memory_space<vmem>>, vector<4x128xf32>,
    %c0_25 = arith.constant 0 : index
    %c2 = arith.constant 2 : index
    %23 = vector.load %arg10[%c0_25, %c2] : memref<4x162xf32, #tpu.memory_space<vmem>>, vector<4x128xf32>
    %cst_26 = arith.constant 0.000000e+00 : f32
    %24 = vector.broadcast %cst_26 : f32 to vector<4x128xf32>
    %25 = vector.shape_cast %14 : vector<1x128xi1> to vector<1x128xi1>
    %26 = vector.broadcast %25 : vector<1x128xi1> to vector<4x128xi1>
    %27 = arith.select %26, %24, %23 : vector<4x128xi1>, vector<4x128xf32>
    %c8 = arith.constant 8 : index
    %c0_27 = arith.constant 0 : index
    %28 = vector.load %arg11[%c8, %c0_27] : memref<37x128xf32, #tpu.memory_space<vmem>>, vector<4x128xf32>
    tpu.vector_store %arg11[%c8, %c0_27], %27 {strides = array<i32>} : memref<37x128xf32, #tpu.memory_space<vmem>>, vector<4x128xf32>,
    %c0_28 = arith.constant 0 : index
    %c16 = arith.constant 16 : index
    %29 = vector.load %arg10[%c0_28, %c16] : memref<4x162xf32, #tpu.memory_space<vmem>>, vector<4x128xf32>
    %cst_29 = arith.constant 0.000000e+00 : f32
    %30 = vector.broadcast %cst_29 : f32 to vector<4x128xf32>
    %31 = vector.shape_cast %11 : vector<1x128xi1> to vector<1x128xi1>
    %32 = vector.broadcast %31 : vector<1x128xi1> to vector<4x128xi1>
    %33 = arith.select %32, %30, %29 : vector<4x128xi1>, vector<4x128xf32>
    %c12 = arith.constant 12 : index
    %c0_30 = arith.constant 0 : index
    %34 = vector.load %arg11[%c12, %c0_30] : memref<37x128xf32, #tpu.memory_space<vmem>>, vector<4x128xf32>
    tpu.vector_store %arg11[%c12, %c0_30], %33 {strides = array<i32>} : memref<37x128xf32, #tpu.memory_space<vmem>>, vector<4x128xf32>,
    %c0_31 = arith.constant 0 : index
    %c17_32 = arith.constant 17 : index
    %35 = vector.load %arg10[%c0_31, %c17_32] : memref<4x162xf32, #tpu.memory_space<vmem>>, vector<4x128xf32>
    %c16_33 = arith.constant 16 : index
    %c0_34 = arith.constant 0 : index
    %36 = vector.load %arg11[%c16_33, %c0_34] : memref<37x128xf32, #tpu.memory_space<vmem>>, vector<4x128xf32>
    tpu.vector_store %arg11[%c16_33, %c0_34], %35 {strides = array<i32>} : memref<37x128xf32, #tpu.memory_space<vmem>>, vector<4x128xf32>,
    %c0_35 = arith.constant 0 : index
    %c18 = arith.constant 18 : index
    %37 = vector.load %arg10[%c0_35, %c18] : memref<4x162xf32, #tpu.memory_space<vmem>>, vector<4x128xf32>
    %cst_36 = arith.constant 0.000000e+00 : f32
    %38 = vector.broadcast %cst_36 : f32 to vector<4x128xf32>
    %39 = vector.shape_cast %14 : vector<1x128xi1> to vector<1x128xi1>
    %40 = vector.broadcast %39 : vector<1x128xi1> to vector<4x128xi1>
    %41 = arith.select %40, %38, %37 : vector<4x128xi1>, vector<4x128xf32>
    %c20 = arith.constant 20 : index
    %c0_37 = arith.constant 0 : index
    %42 = vector.load %arg11[%c20, %c0_37] : memref<37x128xf32, #tpu.memory_space<vmem>>, vector<4x128xf32>
    tpu.vector_store %arg11[%c20, %c0_37], %41 {strides = array<i32>} : memref<37x128xf32, #tpu.memory_space<vmem>>, vector<4x128xf32>,
    %c0_38 = arith.constant 0 : index
    %c32 = arith.constant 32 : index
    %43 = vector.load %arg10[%c0_38, %c32] : memref<4x162xf32, #tpu.memory_space<vmem>>, vector<4x128xf32>
    %cst_39 = arith.constant 0.000000e+00 : f32
    %44 = vector.broadcast %cst_39 : f32 to vector<4x128xf32>
    %45 = vector.shape_cast %11 : vector<1x128xi1> to vector<1x128xi1>
    %46 = vector.broadcast %45 : vector<1x128xi1> to vector<4x128xi1>
    %47 = arith.select %46, %44, %43 : vector<4x128xi1>, vector<4x128xf32>
    %c24 = arith.constant 24 : index
    %c0_40 = arith.constant 0 : index
    %48 = vector.load %arg11[%c24, %c0_40] : memref<37x128xf32, #tpu.memory_space<vmem>>, vector<4x128xf32>
    tpu.vector_store %arg11[%c24, %c0_40], %47 {strides = array<i32>} : memref<37x128xf32, #tpu.memory_space<vmem>>, vector<4x128xf32>,
    %c0_41 = arith.constant 0 : index
    %c33 = arith.constant 33 : index
    %49 = vector.load %arg10[%c0_41, %c33] : memref<4x162xf32, #tpu.memory_space<vmem>>, vector<4x128xf32>
    %c28 = arith.constant 28 : index
    %c0_42 = arith.constant 0 : index
    %50 = vector.load %arg11[%c28, %c0_42] : memref<37x128xf32, #tpu.memory_space<vmem>>, vector<4x128xf32>
    tpu.vector_store %arg11[%c28, %c0_42], %49 {strides = array<i32>} : memref<37x128xf32, #tpu.memory_space<vmem>>, vector<4x128xf32>,
    %c0_43 = arith.constant 0 : index
    %c34 = arith.constant 34 : index
    %51 = vector.load %arg10[%c0_43, %c34] : memref<4x162xf32, #tpu.memory_space<vmem>>, vector<4x128xf32>
    %cst_44 = arith.constant 0.000000e+00 : f32
    %52 = vector.broadcast %cst_44 : f32 to vector<4x128xf32>
    %53 = vector.shape_cast %14 : vector<1x128xi1> to vector<1x128xi1>
    %54 = vector.broadcast %53 : vector<1x128xi1> to vector<4x128xi1>
    %55 = arith.select %54, %52, %51 : vector<4x128xi1>, vector<4x128xf32>
    %c32_45 = arith.constant 32 : index
    %c0_46 = arith.constant 0 : index
    %56 = vector.load %arg11[%c32_45, %c0_46] : memref<37x128xf32, #tpu.memory_space<vmem>>, vector<4x128xf32>
    tpu.vector_store %arg11[%c32_45, %c0_46], %55 {strides = array<i32>} : memref<37x128xf32, #tpu.memory_space<vmem>>, vector<4x128xf32>,
    %cst_47 = arith.constant 1.000000e+00 : f32
    %57 = vector.broadcast %cst_47 : f32 to vector<1x128xf32>
    %c36 = arith.constant 36 : index
    %c0_48 = arith.constant 0 : index
    %58 = vector.load %arg11[%c36, %c0_48] : memref<37x128xf32, #tpu.memory_space<vmem>>, vector<1x128xf32>
    tpu.vector_store %arg11[%c36, %c0_48], %57 {strides = array<i32>} : memref<37x128xf32, #tpu.memory_space<vmem>>, vector<1x128xf32>,
    %c0_49 = arith.constant 0 : index
    %c0_50 = arith.constant 0 : index
    %59 = vector.load %arg6[%c0_49, %c0_50] : memref<8x37xf32, #tpu.memory_space<vmem>>, vector<8x37xf32>
    %c0_51 = arith.constant 0 : index
    %c0_52 = arith.constant 0 : index
    %60 = vector.load %arg11[%c0_51, %c0_52] : memref<37x128xf32, #tpu.memory_space<vmem>>, vector<37x128xf32>
    %cst_53 = arith.constant dense<0.000000e+00> : vector<8x128xf32>
    %61 = tpu.matmul %59, %60, %cst_53 {dimension_numbers = #tpu.dot_dimension_numbers<[1], [0], [0], [1], [0, 0, 1, 1], [], []>} : vector<8x37xf32>, vector<37x128xf32>, vector<8x128xf32> -> vector<8x128xf32>
    %c0_54 = arith.constant 0 : index
    %c0_55 = arith.constant 0 : index
    %c0_56 = arith.constant 0 : index
    %62 = vector.load %arg2[%c0_54, %c0_55, %c0_56] : memref<1x4x128xf32, #tpu.memory_space<vmem>>, vector<1x4x128xf32>
    %63 = vector.shape_cast %62 : vector<1x4x128xf32> to vector<4x128xf32>
    %64 = vector.extract_strided_slice %61 {offsets = [0, 0], sizes = [4, 128], strides = [1, 1]} : vector<8x128xf32> to vector<4x128xf32>
    %65 = arith.mulf %64, %63 : vector<4x128xf32>
    %66 = vector.extract_strided_slice %61 {offsets = [4, 0], sizes = [4, 128], strides = [1, 1]} : vector<8x128xf32> to vector<4x128xf32>
    %67 = arith.addf %65, %66 : vector<4x128xf32>
    %c0_57 = arith.constant 0 : index
    %c0_58 = arith.constant 0 : index
    %68 = vector.load %arg12[%c0_57, %c0_58] : memref<9x128xf32, #tpu.memory_space<vmem>>, vector<4x128xf32>
    tpu.vector_store %arg12[%c0_57, %c0_58], %63 {strides = array<i32>} : memref<9x128xf32, #tpu.memory_space<vmem>>, vector<4x128xf32>,
    %c4_59 = arith.constant 4 : index
    %c0_60 = arith.constant 0 : index
    %69 = vector.load %arg12[%c4_59, %c0_60] : memref<9x128xf32, #tpu.memory_space<vmem>>, vector<4x128xf32>
    tpu.vector_store %arg12[%c4_59, %c0_60], %67 {strides = array<i32>} : memref<9x128xf32, #tpu.memory_space<vmem>>, vector<4x128xf32>,
    %cst_61 = arith.constant 1.000000e+00 : f32
    %70 = vector.broadcast %cst_61 : f32 to vector<1x128xf32>
    %c8_62 = arith.constant 8 : index
    %c0_63 = arith.constant 0 : index
    %71 = vector.load %arg12[%c8_62, %c0_63] : memref<9x128xf32, #tpu.memory_space<vmem>>, vector<1x128xf32>
    tpu.vector_store %arg12[%c8_62, %c0_63], %70 {strides = array<i32>} : memref<9x128xf32, #tpu.memory_space<vmem>>, vector<1x128xf32>,
    %c0_64 = arith.constant 0 : index
    %c0_65 = arith.constant 0 : index
    %72 = vector.load %arg7[%c0_64, %c0_65] : memref<4x9xf32, #tpu.memory_space<vmem>>, vector<4x9xf32>
    %c0_66 = arith.constant 0 : index
    %c0_67 = arith.constant 0 : index
    %73 = vector.load %arg12[%c0_66, %c0_67] : memref<9x128xf32, #tpu.memory_space<vmem>>, vector<9x128xf32>
    %cst_68 = arith.constant dense<0.000000e+00> : vector<4x128xf32>
    %74 = tpu.matmul %72, %73, %cst_68 {dimension_numbers = #tpu.dot_dimension_numbers<[1], [0], [0], [1], [0, 0, 1, 1], [], []>} : vector<4x9xf32>, vector<9x128xf32>, vector<4x128xf32> -> vector<4x128xf32>
    %c0_69 = arith.constant 0 : index
    %c0_70 = arith.constant 0 : index
    %c0_71 = arith.constant 0 : index
    %75 = vector.load %arg9[%c0_69, %c0_70, %c0_71] : memref<1x4x128xf32, #tpu.memory_space<vmem>>, vector<1x4x128xf32>
    %76 = vector.shape_cast %75 : vector<1x4x128xf32> to vector<4x128xf32>
    %77 = vector.shape_cast %74 : vector<4x128xf32> to vector<1x4x128xf32>
    tpu.vector_store %arg9[%c0_69, %c0_70, %c0_71], %77 {strides = array<i32>} : memref<1x4x128xf32, #tpu.memory_space<vmem>>, vector<1x4x128xf32>,
    return
  }
  func.func @transform_0(%arg0: i32, %arg1: i32) -> (i32, i32, i32) {
    %c0_i32 = arith.constant 0 : i32
    %c0_i32_0 = arith.constant 0 : i32
    return %arg0, %c0_i32, %arg1 : i32, i32, i32
  }
  func.func @transform_1(%arg0: i32, %arg1: i32) -> (i32, i32, i32) {
    %c0_i32 = arith.constant 0 : i32
    %c0_i32_0 = arith.constant 0 : i32
    return %arg0, %c0_i32, %arg1 : i32, i32, i32
  }
  func.func @transform_2(%arg0: i32, %arg1: i32) -> (i32, i32, i32, i32) {
    %c0_i32 = arith.constant 0 : i32
    %c0_i32_0 = arith.constant 0 : i32
    %c0_i32_1 = arith.constant 0 : i32
    return %arg0, %arg1, %c0_i32, %c0_i32_0 : i32, i32, i32, i32
  }
  func.func @transform_3(%arg0: i32, %arg1: i32) -> (i32, i32, i32, i32) {
    %c0_i32 = arith.constant 0 : i32
    %c0_i32_0 = arith.constant 0 : i32
    %c0_i32_1 = arith.constant 0 : i32
    return %arg0, %arg1, %c0_i32, %c0_i32_0 : i32, i32, i32, i32
  }
  func.func @transform_4(%arg0: i32, %arg1: i32) -> (i32, i32) {
    %c0_i32 = arith.constant 0 : i32
    %c0_i32_0 = arith.constant 0 : i32
    %c0_i32_1 = arith.constant 0 : i32
    return %c0_i32, %c0_i32_0 : i32, i32
  }
  func.func @transform_5(%arg0: i32, %arg1: i32) -> (i32, i32) {
    %c0_i32 = arith.constant 0 : i32
    %c0_i32_0 = arith.constant 0 : i32
    %c0_i32_1 = arith.constant 0 : i32
    return %c0_i32, %c0_i32_0 : i32, i32
  }
  func.func @transform_6(%arg0: i32, %arg1: i32) -> (i32, i32) {
    %c0_i32 = arith.constant 0 : i32
    %c0_i32_0 = arith.constant 0 : i32
    %c0_i32_1 = arith.constant 0 : i32
    return %c0_i32, %c0_i32_0 : i32, i32
  }
  func.func @transform_7(%arg0: i32, %arg1: i32) -> (i32, i32, i32) {
    %c0_i32 = arith.constant 0 : i32
    %c0_i32_0 = arith.constant 0 : i32
    return %arg0, %c0_i32, %arg1 : i32, i32, i32
  }
}

</mosaic_0001>

<llo_original>
// kernel: tpu_custom_call.1
$region0: #{tpu_custom_call.1}
  #allocation0 [shape = 'u32[]', space=smem, size = 0x4, offset = 0x4, fixed_abs, tag = 'smem constant byte address 0x4 - core index']
  #allocation1 [shape = 'u32[72,128]{1,0:T(1,128)}', space=vmem, size = 0x9000, scoped, tag = 'internal scratch']
  #allocation2 [shape = 'f32[4,162]{1,0:T(4,128)}', space=vmem, size = 0x1000, scoped, tag = 'scratch operand']
  #allocation3 [shape = 'f32[37,128]{1,0:T(8,128)}', space=vmem, size = 0x5000, scoped, tag = 'scratch operand']
  #allocation4 [shape = 'f32[9,128]{1,0:T(8,128)}', space=vmem, size = 0x2000, scoped, tag = 'scratch operand']
  %s0 = inlined_call_operand.hbm [shape: f32[2,4,256], index: 0, kind: input, shape index: {}]
  %s1 = inlined_call_operand.hbm [shape: f32[2,4,256], index: 1, kind: input, shape index: {}]
  %s2 = inlined_call_operand.hbm [shape: f32[2,2,4,16], index: 2, kind: input, shape index: {}]
  %s3 = inlined_call_operand.hbm [shape: f32[2,2,4,16], index: 3, kind: input, shape index: {}]
  %s4 = inlined_call_operand.hbm [shape: f32[8,37], index: 4, kind: input, shape index: {}]
  %s5 = inlined_call_operand.vmem [shape: f32[4,9], index: 5, kind: input, shape index: {}]
  %s6 = inlined_call_operand.hbm [shape: s32[2,128], index: 6, kind: input, shape index: {}]
  %s7 = inlined_call_operand.hbm [shape: f32[2,4,256], index: 7, kind: output, shape index: {}]
  %s8 = sld [smem:[#allocation0]]
  $region85: #{tpu_custom_call.1} parent=0
    _
  %s10 = ssub.s32 1, %s8
  %s11 = scalar_select 0, %s10, %s8
  $region1: #{tpu_custom_call.1} parent=0
    #allocation5 [shape = 'u8[4096]{0}', space=vmem, size = 0x1000, scoped, tag = 'input window, operand 0']
    #allocation6 [shape = 's32[2]{0}', space=sflag, size = 0x8, scoped, tag = 'scoped memory for tpu_custom_call.1']
    #allocation7 [shape = 's32[2]{0}', space=sflag, size = 0x8, scoped, tag = 'scoped memory for tpu_custom_call.1']
    #allocation8 [shape = 'u8[4096]{0}', space=vmem, size = 0x1000, scoped, tag = 'input window, operand 1']
    #allocation9 [shape = 's32[2]{0}', space=sflag, size = 0x8, scoped, tag = 'scoped memory for tpu_custom_call.1']
    #allocation10 [shape = 'u8[4096]{0}', space=vmem, size = 0x1000, scoped, tag = 'input window, operand 2']
    #allocation11 [shape = 'u8[4096]{0}', space=vmem, size = 0x1000, scoped, tag = 'input window, operand 3']
    #allocation12 [shape = 's32[2]{0}', space=sflag, size = 0x8, scoped, tag = 'scoped memory for tpu_custom_call.1']
    #allocation13 [shape = 'u8[4096]{0}', space=vmem, size = 0x1000, scoped, tag = 'input window, operand 4, single buffered']
    #allocation14 [shape = 'u8[1024]{0}', space=vmem, size = 0x400, scoped, tag = 'input window, operand 6, single buffered']
    #allocation15 [shape = 's32[1]{0}', space=sflag, size = 0x4, scoped, tag = 'scoped memory for tpu_custom_call.1']
    #allocation16 [shape = 'u8[4096]{0}', space=vmem, size = 0x1000, scoped, tag = 'output window, operand 0']
    %12 = vsyncpa [#allocation6], 0
    %s13 = scalar_lea.sflag [#allocation6], 1
    %14 = vsyncpa %s13, 0
    %15 = vsyncpa [#allocation9], 0
    %s16 = scalar_lea.sflag [#allocation9], 1
    %17 = vsyncpa %s16, 0
    %18 = vsyncpa [#allocation12], 0
    %s19 = scalar_lea.sflag [#allocation12], 1
    %20 = vsyncpa %s19, 0
    %21 = vsyncpa [#allocation15], 0
    %22 = vsyncpa [#allocation7], 0
    %s23 = scalar_lea.sflag [#allocation7], 1
    %24 = vsyncpa %s23, 0
    loop: start=0, step=1, limit=6
    $region2: #{tpu_custom_call.1} parent=1 // loop_pre_header
      _
    $region3: #{tpu_custom_call.1} parent=1 // loop_header
      %s26 = sphi 0, %s30
      %p27 = scmp.ge.s32.totalorder %s26, 6
      %s33 = sphi 0, %s45
      %s34 = sphi 0, %s41
      %s35 = sphi 0, %s33
      %s36 = sphi 0, %s34
      %s37 = sphi 0, %s35
      %s38 = sphi 0, %s36
      %s50 = sphi 0, %s52
      %s53 = sphi 0, %s50
      %s54 = sphi 0, %s53
      %s70 = sphi 0, %s54
      %s78 = sphi 0, %s80
      %s81 = sphi 0, %s78
      %s82 = sphi 0, %s81
      %s98 = sphi 0, %s82
      %s106 = sphi 0, %s108
      %s109 = sphi 0, %s106
      %s110 = sphi 0, %s109
      %s126 = sphi 0, %s110
      %s134 = sphi 0, %s136
      %s137 = sphi 0, %s134
      %s138 = sphi 0, %s137
      %s154 = sphi 0, %s138
      %s158 = sphi 0, %s158
      %s160 = sphi 0, %s158
      %s161 = sphi 0, %s160
      %s175 = sphi 0, %s161
      %s179 = sphi 0, %s179
      %s181 = sphi 0, %s179
      %s182 = sphi 0, %s181
      %s196 = sphi 0, %s182
      %s200 = sphi 0, %s200
      %s202 = sphi 0, %s200
      %s203 = sphi 0, %s202
      %s217 = sphi 0, %s203
      %s225 = sphi 0, %s227
      %s228 = sphi 0, %s225
      %s229 = sphi 0, %s228
      %s245 = sphi 0, %s229
    $region4: #{tpu_custom_call.1} parent=1 // loop_header_branch
      %29 = sbr.rel (%p27) target = $region8
    $region5: #{tpu_custom_call.1} parent=1 // loop_body
      %s31 = ssub.s32 %s26, 1
      %s32 = ssub.s32 %s26, 2
      %s39 = sadd.s32 1, %s34
      %p40 = scmp.ge.s32.totalorder %s39, 2
      %s41 = scalar_select %p40, 0, %s39
      %s42 = sadd.s32 1, %s33
      %s43 = scalar_select %p40, %s42, %s33
      %p44 = scmp.ge.s32.totalorder %s43, 2
      %s45 = scalar_select %p44, 0, %s43
      %s46 = ssub.s32 %s33, %s45
      %s47 = ssub.s32 %s34, %s41
      %s48 = sor.u32 %s46, %s47
      %p49 = scmp.eq.s32.totalorder %s48, 0
      %s51 = sadd.s32 %s50, 1
      %s52 = scalar_select %p49, %s50, %s51
      %p55 = pneg %p49
      %p56 = scmp.eq.s32.totalorder %s26, 3
      %p57 = por %p55, %p56
      %p58 = scmp.ne.s32.totalorder %s50, %s53
      %p59 = scmp.eq.s32.totalorder %s26, 0
      %p60 = por %p58, %p59
      %p61 = scmp.ne.s32.totalorder %s50, %s53
      %p62 = scmp.eq.s32.totalorder %s31, 3
      %p63 = por %p61, %p62
      %p64 = scmp.ne.s32.totalorder %s53, %s54
      %p65 = scmp.eq.s32.totalorder %s31, 0
      %p66 = por %p64, %p65
      %p67 = scmp.ne.s32.totalorder %s53, %s54
      %p68 = scmp.eq.s32.totalorder %s32, 3
      %p69 = por %p67, %p68
      %p71 = scmp.ne.s32.totalorder %s54, %s70
      %p72 = scmp.eq.s32.totalorder %s32, 0
      %p73 = por %p71, %p72
      %s74 = ssub.s32 %s33, %s45
      %s75 = ssub.s32 %s34, %s41
      %s76 = sor.u32 %s74, %s75
      %p77 = scmp.eq.s32.totalorder %s76, 0
      %s79 = sadd.s32 %s78, 1
      %s80 = scalar_select %p77, %s78, %s79
      %p83 = pneg %p77
      %p84 = scmp.eq.s32.totalorder %s26, 3
      %p85 = por %p83, %p84
      %p86 = scmp.ne.s32.totalorder %s78, %s81
      %p87 = scmp.eq.s32.totalorder %s26, 0
      %p88 = por %p86, %p87
      %p89 = scmp.ne.s32.totalorder %s78, %s81
      %p90 = scmp.eq.s32.totalorder %s31, 3
      %p91 = por %p89, %p90
      %p92 = scmp.ne.s32.totalorder %s81, %s82
      %p93 = scmp.eq.s32.totalorder %s31, 0
      %p94 = por %p92, %p93
      %p95 = scmp.ne.s32.totalorder %s81, %s82
      %p96 = scmp.eq.s32.totalorder %s32, 3
      %p97 = por %p95, %p96
      %p99 = scmp.ne.s32.totalorder %s82, %s98
      %p100 = scmp.eq.s32.totalorder %s32, 0
      %p101 = por %p99, %p100
      %s102 = ssub.s32 %s33, %s45
      %s103 = ssub.s32 %s34, %s41
      %s104 = sor.u32 %s102, %s103
      %p105 = scmp.eq.s32.totalorder %s104, 0
      %s107 = sadd.s32 %s106, 1
      %s108 = scalar_select %p105, %s106, %s107
      %p111 = pneg %p105
      %p112 = scmp.eq.s32.totalorder %s26, 3
      %p113 = por %p111, %p112
      %p114 = scmp.ne.s32.totalorder %s106, %s109
      %p115 = scmp.eq.s32.totalorder %s26, 0
      %p116 = por %p114, %p115
      %p117 = scmp.ne.s32.totalorder %s106, %s109
      %p118 = scmp.eq.s32.totalorder %s31, 3
      %p119 = por %p117, %p118
      %p120 = scmp.ne.s32.totalorder %s109, %s110
      %p121 = scmp.eq.s32.totalorder %s31, 0
      %p122 = por %p120, %p121
      %p123 = scmp.ne.s32.totalorder %s109, %s110
      %p124 = scmp.eq.s32.totalorder %s32, 3
      %p125 = por %p123, %p124
      %p127 = scmp.ne.s32.totalorder %s110, %s126
      %p128 = scmp.eq.s32.totalorder %s32, 0
      %p129 = por %p127, %p128
      %s130 = ssub.s32 %s33, %s45
      %s131 = ssub.s32 %s34, %s41
      %s132 = sor.u32 %s130, %s131
      %p133 = scmp.eq.s32.totalorder %s132, 0
      %s135 = sadd.s32 %s134, 1
      %s136 = scalar_select %p133, %s134, %s135
      %p139 = pneg %p133
      %p140 = scmp.eq.s32.totalorder %s26, 3
      %p141 = por %p139, %p140
      %p142 = scmp.ne.s32.totalorder %s134, %s137
      %p143 = scmp.eq.s32.totalorder %s26, 0
      %p144 = por %p142, %p143
      %p145 = scmp.ne.s32.totalorder %s134, %s137
      %p146 = scmp.eq.s32.totalorder %s31, 3
      %p147 = por %p145, %p146
      %p148 = scmp.ne.s32.totalorder %s137, %s138
      %p149 = scmp.eq.s32.totalorder %s31, 0
      %p150 = por %p148, %p149
      %p151 = scmp.ne.s32.totalorder %s137, %s138
      %p152 = scmp.eq.s32.totalorder %s32, 3
      %p153 = por %p151, %p152
      %p155 = scmp.ne.s32.totalorder %s138, %s154
      %p156 = scmp.eq.s32.totalorder %s32, 0
      %p157 = por %p155, %p156
      %s159 = sadd.s32 %s158, 1
      %p162 = scmp.eq.s32.totalorder %s26, 3
      %p163 = scmp.ne.s32.totalorder %s158, %s160
      %p164 = scmp.eq.s32.totalorder %s26, 0
      %p165 = por %p163, %p164
      %p166 = scmp.ne.s32.totalorder %s158, %s160
      %p167 = scmp.eq.s32.totalorder %s31, 3
      %p168 = por %p166, %p167
      %p169 = scmp.ne.s32.totalorder %s160, %s161
      %p170 = scmp.eq.s32.totalorder %s31, 0
      %p171 = por %p169, %p170
      %p172 = scmp.ne.s32.totalorder %s160, %s161
      %p173 = scmp.eq.s32.totalorder %s32, 3
      %p174 = por %p172, %p173
      %p176 = scmp.ne.s32.totalorder %s161, %s175
      %p177 = scmp.eq.s32.totalorder %s32, 0
      %p178 = por %p176, %p177
      %s180 = sadd.s32 %s179, 1
      %p183 = scmp.eq.s32.totalorder %s26, 3
      %p184 = scmp.ne.s32.totalorder %s179, %s181
      %p185 = scmp.eq.s32.totalorder %s26, 0
      %p186 = por %p184, %p185
      %p187 = scmp.ne.s32.totalorder %s179, %s181
      %p188 = scmp.eq.s32.totalorder %s31, 3
      %p189 = por %p187, %p188
      %p190 = scmp.ne.s32.totalorder %s181, %s182
      %p191 = scmp.eq.s32.totalorder %s31, 0
      %p192 = por %p190, %p191
      %p193 = scmp.ne.s32.totalorder %s181, %s182
      %p194 = scmp.eq.s32.totalorder %s32, 3
      %p195 = por %p193, %p194
      %p197 = scmp.ne.s32.totalorder %s182, %s196
      %p198 = scmp.eq.s32.totalorder %s32, 0
      %p199 = por %p197, %p198
      %s201 = sadd.s32 %s200, 1
      %p204 = scmp.eq.s32.totalorder %s26, 3
      %p205 = scmp.ne.s32.totalorder %s200, %s202
      %p206 = scmp.eq.s32.totalorder %s26, 0
      %p207 = por %p205, %p206
      %p208 = scmp.ne.s32.totalorder %s200, %s202
      %p209 = scmp.eq.s32.totalorder %s31, 3
      %p210 = por %p208, %p209
      %p211 = scmp.ne.s32.totalorder %s202, %s203
      %p212 = scmp.eq.s32.totalorder %s31, 0
      %p213 = por %p211, %p212
      %p214 = scmp.ne.s32.totalorder %s202, %s203
      %p215 = scmp.eq.s32.totalorder %s32, 3
      %p216 = por %p214, %p215
      %p218 = scmp.ne.s32.totalorder %s203, %s217
      %p219 = scmp.eq.s32.totalorder %s32, 0
      %p220 = por %p218, %p219
      %s221 = ssub.s32 %s33, %s45
      %s222 = ssub.s32 %s34, %s41
      %s223 = sor.u32 %s221, %s222
      %p224 = scmp.eq.s32.totalorder %s223, 0
      %s226 = sadd.s32 %s225, 1
      %s227 = scalar_select %p224, %s225, %s226
      %p230 = pneg %p224
      %p231 = scmp.eq.s32.totalorder %s26, 3
      %p232 = por %p230, %p231
      %p233 = scmp.ne.s32.totalorder %s225, %s228
      %p234 = scmp.eq.s32.totalorder %s26, 0
      %p235 = por %p233, %p234
      %p236 = scmp.ne.s32.totalorder %s225, %s228
      %p237 = scmp.eq.s32.totalorder %s31, 3
      %p238 = por %p236, %p237
      %p239 = scmp.ne.s32.totalorder %s228, %s229
      %p240 = scmp.eq.s32.totalorder %s31, 0
      %p241 = por %p239, %p240
      %p242 = scmp.ne.s32.totalorder %s228, %s229
      %p243 = scmp.eq.s32.totalorder %s32, 3
      %p244 = por %p242, %p243
      %p246 = scmp.ne.s32.totalorder %s229, %s245
      %p247 = scmp.eq.s32.totalorder %s32, 0
      %p248 = por %p246, %p247
      %p249 = scmp.le.s32.totalorder 1, %s26
      %p250 = scmp.lt.s32.totalorder %s26, 5
      %p251 = pnand %p249, %p250
      %p252 = pneg %p251
      // Predicated region
      $region9: #{tpu_custom_call.1} parent=5 // pred_check
        _
      $region10: #{tpu_custom_call.1} parent=5 // pred_check_branch
        %254 = sbr.rel (%p251) target = $region12
      $region11: #{tpu_custom_call.1} parent=5 // pred_region
        %s255 = ssub.s32 %s26, 1
        // Predicated region
        $region13: #{tpu_custom_call.1} parent=11 // pred_check
          %p256 = pneg %p171
        $region14: #{tpu_custom_call.1} parent=11 // pred_check_branch
          %258 = sbr.rel (%p256) target = $region16
        $region15: #{tpu_custom_call.1} parent=11 // pred_region
          %260 = vsyncadd [#allocation12], 0
          %s262 = sshll.u32 %s4, 4
          %s263 = int_to_ptr.hbm [resolvable:$true] %s262
          %s264 = sshll.u32 [#allocation13], 4
          %s265 = int_to_ptr.vmem [resolvable:$true] %s264
          %267 = dma.hbm_to_vmem [thread:$0]  %s263, 128, %s265, [#allocation12]
        $region16: #{tpu_custom_call.1} parent=11 // pred_fallthru
          _
        // Predicated region
        $region17: #{tpu_custom_call.1} parent=11 // pred_check
          %p268 = pneg %p192
        $region18: #{tpu_custom_call.1} parent=11 // pred_check_branch
          %270 = sbr.rel (%p268) target = $region20
        $region19: #{tpu_custom_call.1} parent=11 // pred_region
          _
        $region20: #{tpu_custom_call.1} parent=11 // pred_fallthru
          _
        // Predicated region
        $region21: #{tpu_custom_call.1} parent=11 // pred_check
          %p271 = pneg %p213
        $region22: #{tpu_custom_call.1} parent=11 // pred_check_branch
          %273 = sbr.rel (%p271) target = $region24
        $region23: #{tpu_custom_call.1} parent=11 // pred_region
          %275 = vsyncadd [#allocation15], 0
          %s277 = sshll.u32 %s6, 4
          %s278 = int_to_ptr.hbm [resolvable:$true] %s277
          %s279 = sshll.u32 [#allocation14], 4
          %s280 = int_to_ptr.vmem [resolvable:$true] %s279
          %282 = dma.hbm_to_vmem [thread:$0]  %s278, 32, %s280, [#allocation15]
        $region24: #{tpu_custom_call.1} parent=11 // pred_fallthru
          _
      $region12: #{tpu_custom_call.1} parent=5 // pred_fallthru
        _
      %p283 = scmp.lt.s32.totalorder %s26, 4
      // Predicated region
      $region25: #{tpu_custom_call.1} parent=5 // pred_check
        %p284 = pneg %p283
      $region26: #{tpu_custom_call.1} parent=5 // pred_check_branch
        %286 = sbr.rel (%p284) target = $region28
      $region27: #{tpu_custom_call.1} parent=5 // pred_region
        // Predicated region
        $region29: #{tpu_custom_call.1} parent=27 // pred_check
          %p287 = pneg %p60
        $region30: #{tpu_custom_call.1} parent=27 // pred_check_branch
          %289 = sbr.rel (%p287) target = $region32
        $region31: #{tpu_custom_call.1} parent=27 // pred_region
          %s290 = sand.u32 %s50, 1
          %s291 = scalar_lea.sflag [#allocation6], %s290
          %s292 = sand.u32 %s50, 1
          %s293 = smul.addr %s292, 4
          %s294 = scalar_lea.vmem [#allocation5], %s293
          %296 = vsyncadd %s291, 0
          %s297 = smul.addr %s33, 2
          %s298 = sadd.s32 %s34, %s297
          %s299 = smul.addr %s298, 4
          %s300 = scalar_lea.hbm %s0, %s299
          %s302 = sshll.u32 %s300, 4
          %s303 = int_to_ptr.hbm [resolvable:$true] %s302
          %s304 = sshll.u32 %s294, 4
          %s305 = int_to_ptr.vmem [resolvable:$true] %s304
          %307 = dma.hbm_to_vmem [thread:$0]  %s303, 64, %s305, %s291
        $region32: #{tpu_custom_call.1} parent=27 // pred_fallthru
          _
        // Predicated region
        $region33: #{tpu_custom_call.1} parent=27 // pred_check
          %p308 = pneg %p88
        $region34: #{tpu_custom_call.1} parent=27 // pred_check_branch
          %310 = sbr.rel (%p308) target = $region36
        $region35: #{tpu_custom_call.1} parent=27 // pred_region
          %s311 = sand.u32 %s26, 1
          %s312 = scalar_lea.sflag [#allocation9], %s311
          %s313 = sand.u32 %s78, 1
          %s314 = smul.addr %s313, 4
          %s315 = scalar_lea.vmem [#allocation8], %s314
          %317 = vsyncadd %s312, 0
          %s318 = smul.addr %s33, 2
          %s319 = sadd.s32 %s34, %s318
          %s320 = smul.addr %s319, 4
          %s321 = scalar_lea.hbm %s1, %s320
          %s323 = sshll.u32 %s321, 4
          %s324 = int_to_ptr.hbm [resolvable:$true] %s323
          %s325 = sshll.u32 %s315, 4
          %s326 = int_to_ptr.vmem [resolvable:$true] %s325
          %328 = dma.hbm_to_vmem [thread:$0]  %s324, 64, %s326, %s312
        $region36: #{tpu_custom_call.1} parent=27 // pred_fallthru
          _
        // Predicated region
        $region37: #{tpu_custom_call.1} parent=27 // pred_check
          %p329 = pneg %p116
        $region38: #{tpu_custom_call.1} parent=27 // pred_check_branch
          %331 = sbr.rel (%p329) target = $region40
        $region39: #{tpu_custom_call.1} parent=27 // pred_region
          %s332 = sand.u32 %s26, 1
          %s333 = scalar_lea.sflag [#allocation9], %s332
          %s334 = sand.u32 %s106, 1
          %s335 = smul.addr %s334, 4
          %s336 = scalar_lea.vmem [#allocation10], %s335
          %338 = vsyncadd %s333, 0
          %s339 = smul.addr %s33, 2
          %s340 = sadd.s32 %s34, %s339
          %s341 = smul.addr %s340, 4
          %s342 = scalar_lea.hbm %s2, %s341
          %s344 = sshll.u32 %s342, 4
          %s345 = int_to_ptr.hbm [resolvable:$true] %s344
          %s346 = sshll.u32 %s336, 4
          %s347 = int_to_ptr.vmem [resolvable:$true] %s346
          %349 = dma.hbm_to_vmem [thread:$0]  %s345, 64, %s347, %s333
        $region40: #{tpu_custom_call.1} parent=27 // pred_fallthru
          _
        // Predicated region
        $region41: #{tpu_custom_call.1} parent=27 // pred_check
          %p350 = pneg %p144
        $region42: #{tpu_custom_call.1} parent=27 // pred_check_branch
          %352 = sbr.rel (%p350) target = $region44
        $region43: #{tpu_custom_call.1} parent=27 // pred_region
          %s353 = sand.u32 %s26, 1
          %s354 = scalar_lea.sflag [#allocation12], %s353
          %s355 = sand.u32 %s134, 1
          %s356 = smul.addr %s355, 4
          %s357 = scalar_lea.vmem [#allocation11], %s356
          %359 = vsyncadd %s354, 0
          %s360 = smul.addr %s33, 2
          %s361 = sadd.s32 %s34, %s360
          %s362 = smul.addr %s361, 4
          %s363 = scalar_lea.hbm %s3, %s362
          %s365 = sshll.u32 %s363, 4
          %s366 = int_to_ptr.hbm [resolvable:$true] %s365
          %s367 = sshll.u32 %s357, 4
          %s368 = int_to_ptr.vmem [resolvable:$true] %s367
          %370 = dma.hbm_to_vmem [thread:$0]  %s366, 64, %s368, %s354
        $region44: #{tpu_custom_call.1} parent=27 // pred_fallthru
          _
      $region28: #{tpu_custom_call.1} parent=5 // pred_fallthru
        _
      %p371 = scmp.le.s32.totalorder 1, %s26
      %p372 = scmp.lt.s32.totalorder %s26, 5
      %p373 = pnand %p371, %p372
      %p374 = pneg %p373
      // Predicated region
      $region45: #{tpu_custom_call.1} parent=5 // pred_check
        _
      $region46: #{tpu_custom_call.1} parent=5 // pred_check_branch
        %376 = sbr.rel (%p373) target = $region48
      $region47: #{tpu_custom_call.1} parent=5 // pred_region
        %s377 = ssub.s32 %s26, 1
        %s378 = sand.u32 %s53, 1
        %s379 = scalar_lea.sflag [#allocation6], %s378
        %s380 = sand.u32 %s53, 1
        %s381 = smul.addr %s380, 4
        %s382 = scalar_lea.vmem [#allocation5], %s381
        // Predicated region
        $region49: #{tpu_custom_call.1} parent=47 // pred_check
          %p383 = pneg %p66
        $region50: #{tpu_custom_call.1} parent=47 // pred_check_branch
          %385 = sbr.rel (%p383) target = $region52
        $region51: #{tpu_custom_call.1} parent=47 // pred_region
          %387 = dma.done %s379, 64
        $region52: #{tpu_custom_call.1} parent=47 // pred_fallthru
          _
        %s388 = sand.u32 %s31, 1
        %s389 = scalar_lea.sflag [#allocation9], %s388
        %s390 = sand.u32 %s81, 1
        %s391 = smul.addr %s390, 4
        %s392 = scalar_lea.vmem [#allocation8], %s391
        // Predicated region
        $region53: #{tpu_custom_call.1} parent=47 // pred_check
          %p393 = pneg %p94
        $region54: #{tpu_custom_call.1} parent=47 // pred_check_branch
          %395 = sbr.rel (%p393) target = $region56
        $region55: #{tpu_custom_call.1} parent=47 // pred_region
          %397 = dma.done %s389, 64
        $region56: #{tpu_custom_call.1} parent=47 // pred_fallthru
          _
        %s398 = sand.u32 %s31, 1
        %s399 = scalar_lea.sflag [#allocation9], %s398
        %s400 = sand.u32 %s109, 1
        %s401 = smul.addr %s400, 4
        %s402 = scalar_lea.vmem [#allocation10], %s401
        // Predicated region
        $region57: #{tpu_custom_call.1} parent=47 // pred_check
          %p403 = pneg %p122
        $region58: #{tpu_custom_call.1} parent=47 // pred_check_branch
          %405 = sbr.rel (%p403) target = $region60
        $region59: #{tpu_custom_call.1} parent=47 // pred_region
          %407 = dma.done %s399, 64
        $region60: #{tpu_custom_call.1} parent=47 // pred_fallthru
          _
        %s408 = sand.u32 %s31, 1
        %s409 = scalar_lea.sflag [#allocation12], %s408
        %s410 = sand.u32 %s137, 1
        %s411 = smul.addr %s410, 4
        %s412 = scalar_lea.vmem [#allocation11], %s411
        // Predicated region
        $region61: #{tpu_custom_call.1} parent=47 // pred_check
          %p413 = pneg %p150
        $region62: #{tpu_custom_call.1} parent=47 // pred_check_branch
          %415 = sbr.rel (%p413) target = $region64
        $region63: #{tpu_custom_call.1} parent=47 // pred_region
          %417 = dma.done %s409, 64
        $region64: #{tpu_custom_call.1} parent=47 // pred_fallthru
          _
        // Predicated region
        $region65: #{tpu_custom_call.1} parent=47 // pred_check
          %p418 = pneg %p171
        $region66: #{tpu_custom_call.1} parent=47 // pred_check_branch
          %420 = sbr.rel (%p418) target = $region68
        $region67: #{tpu_custom_call.1} parent=47 // pred_region
          %422 = dma.done [#allocation12], 128
        $region68: #{tpu_custom_call.1} parent=47 // pred_fallthru
          _
        // Predicated region
        $region69: #{tpu_custom_call.1} parent=47 // pred_check
          %p423 = pneg %p213
        $region70: #{tpu_custom_call.1} parent=47 // pred_check_branch
          %425 = sbr.rel (%p423) target = $region72
        $region71: #{tpu_custom_call.1} parent=47 // pred_region
          %427 = dma.done [#allocation15], 32
        $region72: #{tpu_custom_call.1} parent=47 // pred_fallthru
          _
        %s428 = sand.u32 %s53, 1
        %s429 = scalar_lea.sflag [#allocation6], %s428
        %s430 = sand.u32 %s53, 1
        %s431 = smul.addr %s430, 4
        %s432 = scalar_lea.vmem [#allocation5], %s431
        %p433 = pneg %p66
        %p434 = pneg %p63
        %s435 = sand.u32 %s31, 1
        %s436 = scalar_lea.sflag [#allocation9], %s435
        %s437 = sand.u32 %s81, 1
        %s438 = smul.addr %s437, 4
        %s439 = scalar_lea.vmem [#allocation8], %s438
        %p440 = pneg %p94
        %p441 = pneg %p91
        %s442 = sand.u32 %s31, 1
        %s443 = scalar_lea.sflag [#allocation9], %s442
        %s444 = sand.u32 %s109, 1
        %s445 = smul.addr %s444, 4
        %s446 = scalar_lea.vmem [#allocation10], %s445
        %p447 = pneg %p122
        %p448 = pneg %p119
        %s449 = sand.u32 %s31, 1
        %s450 = scalar_lea.sflag [#allocation12], %s449
        %s451 = sand.u32 %s137, 1
        %s452 = smul.addr %s451, 4
        %s453 = scalar_lea.vmem [#allocation11], %s452
        %p454 = pneg %p150
        %p455 = pneg %p147
        %p456 = pneg %p171
        %p457 = pneg %p168
        %p458 = pneg %p192
        %p459 = pneg %p189
        %p460 = pneg %p213
        %p461 = pneg %p210
        %p462 = pneg %p241
        %p463 = pneg %p238
        %s464 = sand.u32 %s228, 1
        %s465 = scalar_lea.sflag [#allocation7], %s464
        %s466 = sand.u32 %s228, 1
        %s467 = smul.addr %s466, 4
        %s468 = scalar_lea.vmem [#allocation16], %s467
        %v469 = vld [vmem:[%s402] sm:$0xf]
        %471 = vrot.lane.b32.xlu0 %v469, 1
        %v472 = vpop.permute.xlu0 %471
        %vm474 = vcmask 134152
        %475 = vst.msk [vmem:[#allocation2] sm:$0xf] %vm474, %v472
        %v476 = vld [vmem:[%s392] sm:$0xf]
        %478 = vrot.lane.b32.xlu0 %v476, 17
        %v479 = vpop.permute.xlu0 %478
        %v480 = vrot.slane %v479, 4
        %vm481 = vcmask 138240
        %v482 = vsel %vm481, %v480, %v479
        %vm484 = vcmask 1043592
        %vm485 = vcmask 138244
        %vm486 = vmor %vm485, %vm484
        %487 = vst.msk [vmem:[#allocation2] sm:$0xff] %vm486, %v482
        %v488 = vld [vmem:[%s412] sm:$0xf]
        %490 = vrot.lane.b32.xlu0 %v488, 17
        %v491 = vpop.permute.xlu0 %490
        %vm493 = vcmask 265352
        %494 = vst.msk [vmem:[#allocation2 + $0x4] sm:$0xf] %vm493, %v491
        %v495 = vld [vmem:[#allocation14] sm:$0x1]
        %vm496 = vcmp.ne.s32.totalorder %v495, 0
        %v497 = vld [vmem:[#allocation14 + $0x1] sm:$0x1]
        %vm498 = vcmp.ne.s32.totalorder %v497, 0
        %v499 = vld [vmem:[#allocation2] sm:$0xf]
        %v500 = vsel %vm496, 1, 0
        %v501 = vperm.slane %v500, 0
        %vm502 = vcmp.eq.s32.totalorder %v501, 1
        %v503 = vsel %vm502, 0.0, %v499
        %504 = vst [vmem:[#allocation3] sm:$0xf] %v503
        %v505 = vld [vmem:[#allocation2] sm:$0xff]
        %507 = vst [vmem:[#allocation1] ss:$2 sm:$0xff] %v505
        %v508 = vld.sshfl [vmem:[#allocation1] sm:$0xff pattern:$0x75316420]
        %v509 = vld.sshfl [vmem:[#allocation1 + $0x8] sm:$0xff pattern:$0x75316420]
        %510 = vrot.lane.b32.xlu0 %v508, 127
        %v511 = vpop.permute.xlu0 %510
        %512 = vrot.lane.b32.xlu0 %v509, 127
        %v513 = vpop.permute.xlu0 %512
        %vm514 = vcmask 1039360
        %v515 = vsel %vm514, %v511, %v513
        %517 = vst [vmem:[#allocation3 + $0x4] sm:$0xf] %v515
        %v518 = vld [vmem:[#allocation2] sm:$0xff]
        %v519 = vsel %vm498, 1, 0
        %v520 = vperm.slane %v519, 0
        %vm521 = vcmp.eq.s32.totalorder %v520, 1
        %523 = vst [vmem:[#allocation1] ss:$2 sm:$0xff] %v518
        %v524 = vld.sshfl [vmem:[#allocation1] sm:$0xff pattern:$0x75316420]
        %v525 = vld.sshfl [vmem:[#allocation1 + $0x8] sm:$0xff pattern:$0x75316420]
        %526 = vrot.lane.b32.xlu0 %v524, 126
        %v527 = vpop.permute.xlu0 %526
        %528 = vrot.lane.b32.xlu0 %v525, 126
        %v529 = vpop.permute.xlu0 %528
        %vm530 = vcmask 1031168
        %v531 = vsel %vm530, %v527, %v529
        %v533 = vsel %vm521, 0.0, %v531
        %534 = vst [vmem:[#allocation3 + $0x8] sm:$0xf] %v533
        %v535 = vld [vmem:[#allocation2] sm:$0xff]
        %537 = vst [vmem:[#allocation1] ss:$2 sm:$0xff] %v535
        %v538 = vld.sshfl [vmem:[#allocation1] sm:$0xff pattern:$0x75316420]
        %v539 = vld.sshfl [vmem:[#allocation1 + $0x8] sm:$0xff pattern:$0x75316420]
        %540 = vrot.lane.b32.xlu0 %v538, 112
        %v541 = vpop.permute.xlu0 %540
        %542 = vrot.lane.b32.xlu0 %v539, 112
        %v543 = vpop.permute.xlu0 %542
        %vm544 = vcmask 916480
        %v545 = vsel %vm544, %v541, %v543
        %v547 = vsel %vm502, 0.0, %v545
        %548 = vst [vmem:[#allocation3 + $0xc] sm:$0xf] %v547
        %v549 = vld [vmem:[#allocation2] sm:$0xff]
        %551 = vst [vmem:[#allocation1] ss:$2 sm:$0xff] %v549
        %v552 = vld.sshfl [vmem:[#allocation1] sm:$0xff pattern:$0x75316420]
        %v553 = vld.sshfl [vmem:[#allocation1 + $0x8] sm:$0xff pattern:$0x75316420]
        %554 = vrot.lane.b32.xlu0 %v552, 111
        %v555 = vpop.permute.xlu0 %554
        %556 = vrot.lane.b32.xlu0 %v553, 111
        %v557 = vpop.permute.xlu0 %556
        %vm558 = vcmask 908288
        %v559 = vsel %vm558, %v555, %v557
        %561 = vst [vmem:[#allocation3 + $0x10] sm:$0xf] %v559
        %v562 = vld [vmem:[#allocation2] sm:$0xff]
        %564 = vst [vmem:[#allocation1] ss:$2 sm:$0xff] %v562
        %v565 = vld.sshfl [vmem:[#allocation1] sm:$0xff pattern:$0x75316420]
        %v566 = vld.sshfl [vmem:[#allocation1 + $0x8] sm:$0xff pattern:$0x75316420]
        %567 = vrot.lane.b32.xlu0 %v565, 110
        %v568 = vpop.permute.xlu0 %567
        %569 = vrot.lane.b32.xlu0 %v566, 110
        %v570 = vpop.permute.xlu0 %569
        %vm571 = vcmask 900096
        %v572 = vsel %vm571, %v568, %v570
        %v574 = vsel %vm521, 0.0, %v572
        %575 = vst [vmem:[#allocation3 + $0x14] sm:$0xf] %v574
        %v576 = vld [vmem:[#allocation2] sm:$0xff]
        %578 = vst [vmem:[#allocation1] ss:$2 sm:$0xff] %v576
        %v579 = vld.sshfl [vmem:[#allocation1] sm:$0xff pattern:$0x75316420]
        %v580 = vld.sshfl [vmem:[#allocation1 + $0x8] sm:$0xff pattern:$0x75316420]
        %581 = vrot.lane.b32.xlu0 %v579, 96
        %v582 = vpop.permute.xlu0 %581
        %583 = vrot.lane.b32.xlu0 %v580, 96
        %v584 = vpop.permute.xlu0 %583
        %vm585 = vcmask 785408
        %v586 = vsel %vm585, %v582, %v584
        %v588 = vsel %vm502, 0.0, %v586
        %589 = vst [vmem:[#allocation3 + $0x18] sm:$0xf] %v588
        %v590 = vld [vmem:[#allocation2] sm:$0xff]
        %592 = vst [vmem:[#allocation1] ss:$2 sm:$0xff] %v590
        %v593 = vld.sshfl [vmem:[#allocation1] sm:$0xff pattern:$0x75316420]
        %v594 = vld.sshfl [vmem:[#allocation1 + $0x8] sm:$0xff pattern:$0x75316420]
        %595 = vrot.lane.b32.xlu0 %v593, 95
        %v596 = vpop.permute.xlu0 %595
        %597 = vrot.lane.b32.xlu0 %v594, 95
        %v598 = vpop.permute.xlu0 %597
        %vm599 = vcmask 777216
        %v600 = vsel %vm599, %v596, %v598
        %602 = vst [vmem:[#allocation3 + $0x1c] sm:$0xf] %v600
        %v603 = vld [vmem:[#allocation2] sm:$0xff]
        %605 = vst [vmem:[#allocation1] ss:$2 sm:$0xff] %v603
        %v606 = vld.sshfl [vmem:[#allocation1] sm:$0xff pattern:$0x75316420]
        %v607 = vld.sshfl [vmem:[#allocation1 + $0x8] sm:$0xff pattern:$0x75316420]
        %608 = vrot.lane.b32.xlu0 %v606, 94
        %v609 = vpop.permute.xlu0 %608
        %610 = vrot.lane.b32.xlu0 %v607, 94
        %v611 = vpop.permute.xlu0 %610
        %vm612 = vcmask 769024
        %v613 = vsel %vm612, %v609, %v611
        %v615 = vsel %vm521, 0.0, %v613
        %616 = vst [vmem:[#allocation3 + $0x20] sm:$0xf] %v615
        %617 = vst [vmem:[#allocation3 + $0x24] sm:$0x1] 1.0
        %v618 = vld [vmem:[#allocation13] sm:$0xff]
        %v619 = vld [vmem:[#allocation3] sm:$0xff]
        %v620 = vld [vmem:[#allocation3 + $0x8] sm:$0xff]
        %v621 = vld [vmem:[#allocation3 + $0x10] sm:$0xff]
        %v622 = vld [vmem:[#allocation3 + $0x18] sm:$0xff]
        %v623 = vld [vmem:[#allocation3 + $0x20] sm:$0x1f]
        %vm624 = vcmask 302080
        %v626 = vsel %vm624, %v618, 0
        %vm628 = vcmask 1044480
        %v630 = vsel %vm628, %v623, 0
        %632 = vmatpush.msra.mxu0 0.0
        %633 = vmatpush.msra.mxu0 0.0
        %634 = vmatpush.msra.mxu0 0.0
        %635 = vmatpush.msra.mxu0 0.0
        %636 = vmatpush.msra.mxu0 0.0
        %637 = vmatpush.msra.mxu0 0.0
        %638 = vmatpush.msra.mxu0 0.0
        %639 = vmatpush.msra.mxu0 0.0
        %640 = vmatpush.msra.mxu0 0.0
        %641 = vmatpush.msra.mxu0 0.0
        %642 = vmatpush.msra.mxu0 0.0
        %643 = vmatpush.msra.mxu0 %v630
        %644 = vmatpush.msra.mxu0 %v622
        %645 = vmatpush.msra.mxu0 %v621
        %646 = vmatpush.msra.mxu0 %v620
        %647 = vmatpush.msra.mxu0 %v619
        %648 = vmatmul.f32.gmra.mxu0 %v626
        %v649 = vpop.f32.mrf.mxu0
        %v650 = vadd.f32 0.0, %v649
        %651 = vdwg.mxu0
        %v652 = vld [vmem:[%s382] sm:$0xf]
        %v653 = vmul.f32 %v650, %v652
        %v655 = vrot.slane %v650, 4
        %v657 = vadd.f32 %v653, %v655
        %658 = vst [vmem:[#allocation4] sm:$0xf] %v652
        %659 = vst [vmem:[#allocation4 + $0x4] sm:$0xf] %v657
        %660 = vst [vmem:[#allocation4 + $0x8] sm:$0x1] 1.0
        %v661 = vld [vmem:[%s5] sm:$0xf]
        %v662 = vld [vmem:[#allocation4] sm:$0xff]
        %v663 = vld [vmem:[#allocation4 + $0x8] sm:$0x1]
        %vm664 = vcmask 72704
        %v666 = vsel %vm664, %v661, 0
        %vm668 = vcmask 1040384
        %v670 = vsel %vm668, %v663, 0
        %672 = vmatpush.msra.mxu0 0.0
        %673 = vmatpush.msra.mxu0 0.0
        %674 = vmatpush.msra.mxu0 0.0
        %675 = vmatpush.msra.mxu0 0.0
        %676 = vmatpush.msra.mxu0 0.0
        %677 = vmatpush.msra.mxu0 0.0
        %678 = vmatpush.msra.mxu0 0.0
        %679 = vmatpush.msra.mxu0 0.0
        %680 = vmatpush.msra.mxu0 0.0
        %681 = vmatpush.msra.mxu0 0.0
        %682 = vmatpush.msra.mxu0 0.0
        %683 = vmatpush.msra.mxu0 0.0
        %684 = vmatpush.msra.mxu0 0.0
        %685 = vmatpush.msra.mxu0 0.0
        %686 = vmatpush.msra.mxu0 %v670
        %687 = vmatpush.msra.mxu0 %v662
        %688 = vmatmul.f32.gmra.mxu0 %v666
        %v689 = vpop.f32.mrf.mxu0
        %v690 = vadd.f32 0.0, %v689
        %691 = vdwg.mxu0
        %692 = vst [vmem:[%s468] sm:$0xf] %v690
        %s693 = sand.u32 %s228, 1
        %s694 = scalar_lea.sflag [#allocation7], %s693
        %s695 = sand.u32 %s228, 1
        %s696 = smul.addr %s695, 4
        %s697 = scalar_lea.vmem [#allocation16], %s696
        // Predicated region
        $region73: #{tpu_custom_call.1} parent=47 // pred_check
          %p698 = pneg %p238
        $region74: #{tpu_custom_call.1} parent=47 // pred_check_branch
          %700 = sbr.rel (%p698) target = $region76
        $region75: #{tpu_custom_call.1} parent=47 // pred_region
          %702 = vsyncadd %s694, 0
          %s703 = smul.addr %s35, 2
          %s704 = sadd.s32 %s36, %s703
          %s705 = smul.addr %s704, 4
          %s706 = scalar_lea.hbm %s7, %s705
          %s708 = sshll.u32 %s697, 4
          %s709 = int_to_ptr.vmem [resolvable:$true] %s708
          %s710 = sshll.u32 %s706, 4
          %s711 = int_to_ptr.hbm [resolvable:$true] %s710
          %713 = dma.vmem_to_hbm [thread:$0]  %s709, 64, %s711, %s694
        $region76: #{tpu_custom_call.1} parent=47 // pred_fallthru
          _
      $region48: #{tpu_custom_call.1} parent=5 // pred_fallthru
        _
      %p714 = scmp.le.s32.totalorder 2, %s26
      // Predicated region
      $region77: #{tpu_custom_call.1} parent=5 // pred_check
        %p715 = pneg %p714
      $region78: #{tpu_custom_call.1} parent=5 // pred_check_branch
        %717 = sbr.rel (%p715) target = $region80
      $region79: #{tpu_custom_call.1} parent=5 // pred_region
        %s718 = ssub.s32 %s26, 2
        // Predicated region
        $region81: #{tpu_custom_call.1} parent=79 // pred_check
          %p719 = pneg %p244
        $region82: #{tpu_custom_call.1} parent=79 // pred_check_branch
          %721 = sbr.rel (%p719) target = $region84
        $region83: #{tpu_custom_call.1} parent=79 // pred_region
          %s722 = sand.u32 %s229, 1
          %s723 = scalar_lea.sflag [#allocation7], %s722
          %s724 = sand.u32 %s229, 1
          %s725 = smul.addr %s724, 4
          %s726 = scalar_lea.vmem [#allocation16], %s725
          %728 = dma.done %s723, 64
        $region84: #{tpu_custom_call.1} parent=79 // pred_fallthru
          _
      $region80: #{tpu_custom_call.1} parent=5 // pred_fallthru
        _
    $region6: #{tpu_custom_call.1} parent=1 // loop_footer
      %s30 = sadd.s32 1, %s26
    $region7: #{tpu_custom_call.1} parent=1 // loop_footer_branch
      %25 = sbr.rel target = $region3
    $region8: #{tpu_custom_call.1} parent=1 // loop_exit
      _
    %729 = vsyncpa [#allocation6], 1
    %s730 = scalar_lea.sflag [#allocation6], 1
    %731 = vsyncpa %s730, 1
    %732 = vsyncpa [#allocation9], 1
    %s733 = scalar_lea.sflag [#allocation9], 1
    %734 = vsyncpa %s733, 1
    %735 = vsyncpa [#allocation12], 1
    %s736 = scalar_lea.sflag [#allocation12], 1
    %737 = vsyncpa %s736, 1
    %738 = vsyncpa [#allocation15], 1
    %739 = vsyncpa [#allocation7], 1
    %s740 = scalar_lea.sflag [#allocation7], 1
    %741 = vsyncpa %s740, 1

</llo_original>
